<compile_context>
chip_gen: v7x
topology: tpu7x:2x2x1
jax: 0.10.0
libtpu: 0.0.40
codegen_flags: <defaults>
</compile_context>

<pallas_src>
import functools
import math

import jax
import jax.numpy as jnp
from jax.experimental import pallas as pl
from jax.experimental.pallas import tpu as pltpu


def _round_up(v, m):
    return (v + m - 1) // m * m


def aaminter_kernel(x_ref, lab_ref, w_ref, out_ref, *,
                    num_center, top_k, cos_m, sin_m, th, mm, s,
                    margin_negative, easy_margin, n_valid_classes):
    x = x_ref[...].astype(jnp.float32)                       # (TB, D)
    lab = lab_ref[...]                                       # (TB, 1) int32
    TB = x.shape[0]
    Cp = w_ref.shape[2]

    # --- F.normalize(x, dim=1): rsqrt (EUP slot) with torch-style eps on the norm.
    inv_xn = jax.lax.rsqrt(
        jnp.maximum(jnp.sum(x * x, axis=-1, keepdims=True), 1e-24))
    xn_bf = (x * inv_xn).astype(jnp.bfloat16)                 # bf16 MXU operand

    # --- cosine = max over centers of xn @ Wn_c (weight pre-normalized in the
    #     wrapper, bf16, laid out (num_center, D, Cp): class axis lane-dense,
    #     f32 accumulation).
    cosine = jnp.dot(xn_bf, w_ref[0], preferred_element_type=jnp.float32)
    for c in range(1, num_center):                            # static, small
        cosine = jnp.maximum(
            cosine,
            jnp.dot(xn_bf, w_ref[c], preferred_element_type=jnp.float32))

    class_ids = jax.lax.broadcasted_iota(jnp.int32, (TB, Cp), 1)
    is_target = class_ids == lab                              # (TB, Cp) bool

    # --- additive pad bias: 0 on real classes, -1e30 on padded lanes (1, Cp).
    if n_valid_classes != Cp:
        pad_bias = jnp.where(
            jax.lax.broadcasted_iota(jnp.int32, (1, Cp), 1) < n_valid_classes,
            jnp.float32(0.0), jnp.float32(-1e30))
    else:
        pad_bias = None

    # --- AAM additive angular margin, computed only on the (TB, 1) target cosine.
    tgt_cos = jnp.sum(jnp.where(is_target, cosine, 0.0), axis=1, keepdims=True)
    tgt_sin = jnp.sqrt(jnp.clip(1.0 - tgt_cos * tgt_cos, 0.0, 1.0))
    phi = tgt_cos * cos_m - tgt_sin * sin_m
    if easy_margin:
        phi = jnp.where(tgt_cos > 0, phi, tgt_cos)
    else:
        phi = jnp.where(tgt_cos - th > 0, phi, tgt_cos - mm)
    tgt_logit = phi * s                                       # (TB, 1)

    # --- inter-class negative margin on the top_k hardest negatives: find the
    #     k-th largest (distinct) masked cosine per row, then add the margin to
    #     everything >= that threshold (target sentinel -1.0 as in the reference).
    # TODO(synk): exact torch.sort tie ordering is not reproduced (all exact ties
    # receive the margin), same tie-permissive behaviour as before.
    masked = jnp.where(is_target, -1.0, cosine)
    if pad_bias is not None:
        masked = masked + pad_bias                            # exclude padded lanes
    thr = jnp.full((TB, 1), jnp.inf, dtype=jnp.float32)
    for _ in range(top_k):                                    # static, small
        thr = jnp.max(jnp.where(masked < thr, masked, -jnp.inf),
                      axis=1, keepdims=True)

    neg_logits = (cosine + jnp.where(masked >= thr, margin_negative, 0.0)) * s
    if pad_bias is not None:
        neg_logits = neg_logits + pad_bias                    # kill padded lanes
    logits = jnp.where(is_target, tgt_logit, neg_logits)      # (TB, Cp)

    # --- per-row cross entropy (target term reused from tgt_logit) and top-1.
    row_max = jnp.max(logits, axis=1, keepdims=True)
    lse = row_max + jnp.log(
        jnp.sum(jnp.exp(logits - row_max), axis=1, keepdims=True))
    row_loss = lse - tgt_logit                                # (TB, 1)
    row_correct = (tgt_logit >= row_max).astype(jnp.float32)  # (TB, 1)

    # Lane-dense merged store: lane 0 = loss, lane 1 = correct.
    lane = jax.lax.broadcasted_iota(jnp.int32, out_ref.shape, 1)
    out_ref[...] = jnp.where(lane == 0, row_loss,
                             jnp.where(lane == 1, row_correct, 0.0))


def _vmem_estimate(TB, D, Cp, num_center, weight_buffers):
    return (2 * TB * D * 4                              # x tiles (double-buffered)
            + 2 * TB * 4                                # label tiles
            + 2 * TB * 128 * 4                          # output tiles
            + weight_buffers * num_center * D * Cp * 2  # resident bf16 weight
            + 10 * TB * Cp * 4                          # live (TB, Cp) f32 temps
            + (1 << 21))                                # slack


def aaminter_forward(x, weight, label, *, nClasses, num_center, top_k,
                     margin=0.2, scale=30.0, margin_negative=0.06,
                     easy_margin=False, batch_tile=None):
    x = jnp.asarray(x, jnp.float32)
    B, D = x.shape

    # Weight prep (once, in XLA): L2-normalize rows in f32; row j*num_center + c of
    # the original weight becomes w3[c, :, j]; pad classes to a lane multiple and
    # cast to bf16 for the MXU.
    w = jnp.asarray(weight, jnp.float32)
    wn = w * jax.lax.rsqrt(
        jnp.maximum(jnp.sum(w * w, axis=1, keepdims=True), 1e-24))
    w3 = wn.reshape(nClasses, num_center, D).transpose(1, 2, 0)   # (nc, D, C)
    Cp = _round_up(max(nClasses, 128), 128)
    if Cp != nClasses:
        w3 = jnp.pad(w3, ((0, 0), (0, 0), (0, Cp - nClasses)))
    w3 = w3.astype(jnp.bfloat16)

    # --- chip-aware budgets (v5e/v6e: 128 MiB VMEM, v7x: 64 MiB / 2 TCs).
    dev_kind = ""
    try:
        dev_kind = jax.devices()[0].device_kind.lower()
    except Exception:
        pass
    is_v7 = ("v7" in dev_kind) or ("7x" in dev_kind)
    try:
        vmem_phys = int(pltpu.get_tpu_info().vmem_capacity_bytes)
    except Exception:
        vmem_phys = (64 if is_v7 else 128) * 1024 * 1024

    # --- batch tile: biggest tile whose (single-buffered) weight + f32 temporaries
    #     fit in VMEM; capped at 128 on v7x.
    # TODO(synk): for very large nClasses on v7x a class-axis-chunked two-pass
    # scheme would be preferable; TB shrinking is the cheap fallback used here.
    if batch_tile is None:
        batch_tile = 8
        budget = int(vmem_phys * 0.8)
        for cand in (256, 128, 64, 32, 16, 8):
            if _vmem_estimate(cand, D, Cp, num_center, 1) <= budget:
                batch_tile = cand
                break
        if is_v7:
            batch_tile = min(batch_tile, 128)

    TB = min(batch_tile, _round_up(B, 8))
    Bp = _round_up(B, TB)
    if Bp != B:
        x = jnp.pad(x, ((0, Bp - B), (0, 0)))
    lab2 = jnp.pad(jnp.asarray(label, jnp.int32).reshape(B, 1),
                   ((0, Bp - B), (0, 0)))
    grid = (Bp // TB,)

    kernel = functools.partial(
        aaminter_kernel,
        num_center=num_center, top_k=top_k,
        cos_m=math.cos(margin), sin_m=math.sin(margin),
        th=math.cos(math.pi - margin), mm=math.sin(math.pi - margin) * margin,
        s=float(scale), margin_negative=float(margin_negative),
        easy_margin=easy_margin, n_valid_classes=nClasses)

    x_spec = pl.BlockSpec((TB, D), lambda i: (i, 0))
    lab_spec = pl.BlockSpec((TB, 1), lambda i: (i, 0))
    out_spec = pl.BlockSpec((TB, 128), lambda i: (i, 0))
    out_shape = jax.ShapeDtypeStruct((Bp, 128), jnp.float32)

    # Dimension semantics: try CORE_PARALLEL on v7x-like chips (2 TCs/chip).
    sem_choices = []
    if is_v7 and hasattr(pltpu, "CORE_PARALLEL") and Bp // TB >= 2:
        sem_choices.append((pltpu.CORE_PARALLEL,))
    sem_choices.append(("parallel",))

    # Attempt configs: (dimension_semantics, weight buffer count).  Later entries
    # are strictly more conservative; the last one always compiles.
    configs = []
    if hasattr(pl, "Buffered"):
        for sem in sem_choices:
            configs.append((sem, 1))
    configs.append((("parallel",), 2))

    out = None
    last_err = None
    for sem, wbufs in configs:
        try:
            if wbufs == 1:
                # Constant index_map -> single-buffer the resident weight
                # (double-buffering it only wastes VMEM, critical on v7x).
                w_spec = pl.BlockSpec((num_center, D, Cp), lambda i: (0, 0, 0),
                                      pipeline_mode=pl.Buffered(1))
            else:
                w_spec = pl.BlockSpec((num_center, D, Cp), lambda i: (0, 0, 0))
            vmem_needed = _vmem_estimate(TB, D, Cp, num_center, wbufs)
            vmem_limit = int(min(max(vmem_needed, 32 * 1024 * 1024),
                                 int(vmem_phys * 0.85)))
            out = pl.pallas_call(
                kernel,
                out_shape=out_shape,
                grid=grid,
                in_specs=[x_spec, lab_spec, w_spec],
                out_specs=out_spec,
                compiler_params=pltpu.CompilerParams(
                    dimension_semantics=sem,
                    vmem_limit_bytes=vmem_limit),
            )(x, lab2, w3)
            break
        except Exception as e:  # feature fallback (older pallas / unsupported sem)
            last_err = e
            out = None
    if out is None:
        raise last_err

    loss = jnp.sum(out[:B, 0]) / B
    prec1 = jnp.sum(out[:B, 1]) * (100.0 / B)
    return loss, prec1


if __name__ == "__main__":
    # Small shapes consistent with the module: x is (batch, nOut) embeddings.
    B, nOut, nClasses, num_center, top_k = 8, 32, 16, 3, 5

    key = jax.random.PRNGKey(0)
    kx, kw, kl = jax.random.split(key, 3)
    x = jax.random.normal(kx, (B, nOut), dtype=jnp.float32)
    # xavier_normal_(gain=1): std = sqrt(2 / (fan_in + fan_out))
    std = math.sqrt(2.0 / (nClasses * num_center + nOut))
    weight = std * jax.random.normal(kw, (nClasses * num_center, nOut),
                                     dtype=jnp.float32)
    label = jax.random.randint(kl, (B,), 0, nClasses, dtype=jnp.int32)

    loss, prec1 = aaminter_forward(
        x, weight, label,
        nClasses=nClasses, num_center=num_center, top_k=top_k,
        margin=0.2, scale=30.0, margin_negative=0.06, easy_margin=False)

    jax.block_until_ready((loss, prec1))
    print("KERNEL_OK")
</pallas_src>

<mosaic_0001>
module attributes {stable_mosaic.version = 11 : i64} {
  func.func @aaminter_kernel(%arg0: i32, %arg1: memref<8x32xf32, #tpu.memory_space<vmem>>, %arg2: memref<8x1xi32, #tpu.memory_space<vmem>>, %arg3: memref<3x32x128xbf16, #tpu.memory_space<vmem>>, %arg4: memref<8x128xf32, #tpu.memory_space<vmem>>) attributes {dimension_semantics = [#tpu.dimension_semantics<parallel>], iteration_bounds = array<i64: 1>, scalar_prefetch = 0 : i64, scratch_operands = 0 : i64, tpu.core_type = #tpu.core_type<tc>, window_params = [{transform_indices = @transform_0, window_bounds = array<i64: 8, 32>}, {transform_indices = @transform_1, window_bounds = array<i64: 8, 1>}, {pipeline_mode = #tpu.pipeline_mode<synchronous>, transform_indices = @transform_2, window_bounds = array<i64: 3, 32, 128>}, {transform_indices = @transform_3, window_bounds = array<i64: 8, 128>}]} {
    %c0 = arith.constant 0 : index
    %c0_0 = arith.constant 0 : index
    %0 = vector.load %arg1[%c0, %c0_0] : memref<8x32xf32, #tpu.memory_space<vmem>>, vector<8x32xf32>
    %c0_1 = arith.constant 0 : index
    %c0_2 = arith.constant 0 : index
    %1 = vector.load %arg2[%c0_1, %c0_2] : memref<8x1xi32, #tpu.memory_space<vmem>>, vector<8x1xi32>
    %2 = arith.mulf %0, %0 : vector<8x32xf32>
    %cst = arith.constant dense<0.000000e+00> : vector<8xf32>
    %3 = vector.multi_reduction <add>, %2, %cst [1] : vector<8x32xf32> to vector<8xf32>
    %4 = vector.shape_cast %3 : vector<8xf32> to vector<8x1xf32>
    %cst_3 = arith.constant 1.000000e-24 : f32
    %5 = vector.broadcast %cst_3 : f32 to vector<8x1xf32>
    %6 = arith.maximumf %4, %5 : vector<8x1xf32>
    %7 = math.rsqrt %6 : vector<8x1xf32>
    %8 = vector.broadcast %7 : vector<8x1xf32> to vector<8x32xf32>
    %9 = arith.mulf %0, %8 : vector<8x32xf32>
    %10 = arith.truncf %9 : vector<8x32xf32> to vector<8x32xbf16>
    %c0_4 = arith.constant 0 : index
    %c0_5 = arith.constant 0 : index
    %c0_6 = arith.constant 0 : index
    %11 = vector.load %arg3[%c0_4, %c0_5, %c0_6] : memref<3x32x128xbf16, #tpu.memory_space<vmem>>, vector<1x32x128xbf16>
    %12 = vector.shape_cast %11 : vector<1x32x128xbf16> to vector<32x128xbf16>
    %cst_7 = arith.constant dense<0.000000e+00> : vector<8x128xf32>
    %13 = tpu.matmul %10, %12, %cst_7 {dimension_numbers = #tpu.dot_dimension_numbers<[1], [0], [0], [1], [0, 0, 1, 1], [], []>} : vector<8x32xbf16>, vector<32x128xbf16>, vector<8x128xf32> -> vector<8x128xf32>
    %c1 = arith.constant 1 : index
    %c0_8 = arith.constant 0 : index
    %c0_9 = arith.constant 0 : index
    %14 = vector.load %arg3[%c1, %c0_8, %c0_9] : memref<3x32x128xbf16, #tpu.memory_space<vmem>>, vector<1x32x128xbf16>
    %15 = vector.shape_cast %14 : vector<1x32x128xbf16> to vector<32x128xbf16>
    %cst_10 = arith.constant dense<0.000000e+00> : vector<8x128xf32>
    %16 = tpu.matmul %10, %15, %cst_10 {dimension_numbers = #tpu.dot_dimension_numbers<[1], [0], [0], [1], [0, 0, 1, 1], [], []>} : vector<8x32xbf16>, vector<32x128xbf16>, vector<8x128xf32> -> vector<8x128xf32>
    %17 = arith.maximumf %13, %16 : vector<8x128xf32>
    %c2 = arith.constant 2 : index
    %c0_11 = arith.constant 0 : index
    %c0_12 = arith.constant 0 : index
    %18 = vector.load %arg3[%c2, %c0_11, %c0_12] : memref<3x32x128xbf16, #tpu.memory_space<vmem>>, vector<1x32x128xbf16>
    %19 = vector.shape_cast %18 : vector<1x32x128xbf16> to vector<32x128xbf16>
    %cst_13 = arith.constant dense<0.000000e+00> : vector<8x128xf32>
    %20 = tpu.matmul %10, %19, %cst_13 {dimension_numbers = #tpu.dot_dimension_numbers<[1], [0], [0], [1], [0, 0, 1, 1], [], []>} : vector<8x32xbf16>, vector<32x128xbf16>, vector<8x128xf32> -> vector<8x128xf32>
    %21 = arith.maximumf %17, %20 : vector<8x128xf32>
    %22 = tpu.iota {dimensions = array<i32: 1>} : vector<8x128xi32>
    %23 = vector.broadcast %1 : vector<8x1xi32> to vector<8x128xi32>
    %24 = arith.cmpi eq, %22, %23 : vector<8x128xi32>
    %25 = tpu.iota {dimensions = array<i32: 1>} : vector<1x128xi32>
    %c16_i32 = arith.constant 16 : i32
    %26 = vector.broadcast %c16_i32 : i32 to vector<1x128xi32>
    %27 = arith.cmpi slt, %25, %26 : vector<1x128xi32>
    %cst_14 = arith.constant 0.000000e+00 : f32
    %cst_15 = arith.constant -1.000000e+30 : f32
    %28 = vector.broadcast %cst_14 : f32 to vector<1x128xf32>
    %29 = vector.broadcast %cst_15 : f32 to vector<1x128xf32>
    %30 = arith.select %27, %28, %29 : vector<1x128xi1>, vector<1x128xf32>
    %cst_16 = arith.constant 0.000000e+00 : f32
    %31 = vector.broadcast %cst_16 : f32 to vector<8x128xf32>
    %32 = arith.select %24, %21, %31 : vector<8x128xi1>, vector<8x128xf32>
    %cst_17 = arith.constant dense<0.000000e+00> : vector<8xf32>
    %33 = vector.multi_reduction <add>, %32, %cst_17 [1] : vector<8x128xf32> to vector<8xf32>
    %34 = vector.shape_cast %33 : vector<8xf32> to vector<8x1xf32>
    %35 = arith.mulf %34, %34 : vector<8x1xf32>
    %cst_18 = arith.constant 1.000000e+00 : f32
    %36 = vector.broadcast %cst_18 : f32 to vector<8x1xf32>
    %37 = arith.subf %36, %35 : vector<8x1xf32>
    %cst_19 = arith.constant 0.000000e+00 : f32
    %cst_20 = arith.constant 1.000000e+00 : f32
    %38 = vector.broadcast %cst_19 : f32 to vector<8x1xf32>
    %39 = arith.maximumf %38, %37 : vector<8x1xf32>
    %40 = vector.broadcast %cst_20 : f32 to vector<8x1xf32>
    %41 = arith.minimumf %40, %39 : vector<8x1xf32>
    %42 = math.sqrt %41 : vector<8x1xf32>
    %cst_21 = arith.constant 0.980066597 : f32
    %43 = vector.broadcast %cst_21 : f32 to vector<8x1xf32>
    %44 = arith.mulf %34, %43 : vector<8x1xf32>
    %cst_22 = arith.constant 0.198669329 : f32
    %45 = vector.broadcast %cst_22 : f32 to vector<8x1xf32>
    %46 = arith.mulf %42, %45 : vector<8x1xf32>
    %47 = arith.subf %44, %46 : vector<8x1xf32>
    %cst_23 = arith.constant -0.980066597 : f32
    %48 = vector.broadcast %cst_23 : f32 to vector<8x1xf32>
    %49 = arith.subf %34, %48 : vector<8x1xf32>
    %cst_24 = arith.constant 0.000000e+00 : f32
    %50 = vector.broadcast %cst_24 : f32 to vector<8x1xf32>
    %51 = arith.cmpf ogt, %49, %50 : vector<8x1xf32>
    %cst_25 = arith.constant 0.0397338644 : f32
    %52 = vector.broadcast %cst_25 : f32 to vector<8x1xf32>
    %53 = arith.subf %34, %52 : vector<8x1xf32>
    %54 = arith.select %51, %47, %53 : vector<8x1xi1>, vector<8x1xf32>
    %cst_26 = arith.constant 3.000000e+01 : f32
    %55 = vector.broadcast %cst_26 : f32 to vector<8x1xf32>
    %56 = arith.mulf %54, %55 : vector<8x1xf32>
    %cst_27 = arith.constant -1.000000e+00 : f32
    %57 = vector.broadcast %cst_27 : f32 to vector<8x128xf32>
    %58 = arith.select %24, %57, %21 : vector<8x128xi1>, vector<8x128xf32>
    %59 = vector.broadcast %30 : vector<1x128xf32> to vector<8x128xf32>
    %60 = arith.addf %58, %59 : vector<8x128xf32>
    %cst_28 = arith.constant 0x7F800000 : f32
    %61 = vector.broadcast %cst_28 : f32 to vector<8x1xf32>
    %62 = vector.broadcast %61 : vector<8x1xf32> to vector<8x128xf32>
    %63 = arith.cmpf olt, %60, %62 : vector<8x128xf32>
    %cst_29 = arith.constant 0xFF800000 : f32
    %64 = vector.broadcast %cst_29 : f32 to vector<8x128xf32>
    %65 = arith.select %63, %60, %64 : vector<8x128xi1>, vector<8x128xf32>
    %cst_30 = arith.constant dense<0xFF800000> : vector<8xf32>
    %66 = vector.multi_reduction <maximumf>, %65, %cst_30 [1] : vector<8x128xf32> to vector<8xf32>
    %67 = vector.shape_cast %66 : vector<8xf32> to vector<8x1xf32>
    %68 = vector.broadcast %67 : vector<8x1xf32> to vector<8x128xf32>
    %69 = arith.cmpf olt, %60, %68 : vector<8x128xf32>
    %cst_31 = arith.constant 0xFF800000 : f32
    %70 = vector.broadcast %cst_31 : f32 to vector<8x128xf32>
    %71 = arith.select %69, %60, %70 : vector<8x128xi1>, vector<8x128xf32>
    %cst_32 = arith.constant dense<0xFF800000> : vector<8xf32>
    %72 = vector.multi_reduction <maximumf>, %71, %cst_32 [1] : vector<8x128xf32> to vector<8xf32>
    %73 = vector.shape_cast %72 : vector<8xf32> to vector<8x1xf32>
    %74 = vector.broadcast %73 : vector<8x1xf32> to vector<8x128xf32>
    %75 = arith.cmpf olt, %60, %74 : vector<8x128xf32>
    %cst_33 = arith.constant 0xFF800000 : f32
    %76 = vector.broadcast %cst_33 : f32 to vector<8x128xf32>
    %77 = arith.select %75, %60, %76 : vector<8x128xi1>, vector<8x128xf32>
    %cst_34 = arith.constant dense<0xFF800000> : vector<8xf32>
    %78 = vector.multi_reduction <maximumf>, %77, %cst_34 [1] : vector<8x128xf32> to vector<8xf32>
    %79 = vector.shape_cast %78 : vector<8xf32> to vector<8x1xf32>
    %80 = vector.broadcast %79 : vector<8x1xf32> to vector<8x128xf32>
    %81 = arith.cmpf olt, %60, %80 : vector<8x128xf32>
    %cst_35 = arith.constant 0xFF800000 : f32
    %82 = vector.broadcast %cst_35 : f32 to vector<8x128xf32>
    %83 = arith.select %81, %60, %82 : vector<8x128xi1>, vector<8x128xf32>
    %cst_36 = arith.constant dense<0xFF800000> : vector<8xf32>
    %84 = vector.multi_reduction <maximumf>, %83, %cst_36 [1] : vector<8x128xf32> to vector<8xf32>
    %85 = vector.shape_cast %84 : vector<8xf32> to vector<8x1xf32>
    %86 = vector.broadcast %85 : vector<8x1xf32> to vector<8x128xf32>
    %87 = arith.cmpf olt, %60, %86 : vector<8x128xf32>
    %cst_37 = arith.constant 0xFF800000 : f32
    %88 = vector.broadcast %cst_37 : f32 to vector<8x128xf32>
    %89 = arith.select %87, %60, %88 : vector<8x128xi1>, vector<8x128xf32>
    %cst_38 = arith.constant dense<0xFF800000> : vector<8xf32>
    %90 = vector.multi_reduction <maximumf>, %89, %cst_38 [1] : vector<8x128xf32> to vector<8xf32>
    %91 = vector.shape_cast %90 : vector<8xf32> to vector<8x1xf32>
    %92 = vector.broadcast %91 : vector<8x1xf32> to vector<8x128xf32>
    %93 = arith.cmpf oge, %60, %92 : vector<8x128xf32>
    %cst_39 = arith.constant 6.000000e-02 : f32
    %cst_40 = arith.constant 0.000000e+00 : f32
    %94 = vector.broadcast %cst_39 : f32 to vector<8x128xf32>
    %95 = vector.broadcast %cst_40 : f32 to vector<8x128xf32>
    %96 = arith.select %93, %94, %95 : vector<8x128xi1>, vector<8x128xf32>
    %97 = arith.addf %21, %96 : vector<8x128xf32>
    %cst_41 = arith.constant 3.000000e+01 : f32
    %98 = vector.broadcast %cst_41 : f32 to vector<8x128xf32>
    %99 = arith.mulf %97, %98 : vector<8x128xf32>
    %100 = vector.broadcast %30 : vector<1x128xf32> to vector<8x128xf32>
    %101 = arith.addf %99, %100 : vector<8x128xf32>
    %102 = vector.shape_cast %56 : vector<8x1xf32> to vector<8x1xf32>
    %103 = vector.broadcast %102 : vector<8x1xf32> to vector<8x128xf32>
    %104 = arith.select %24, %103, %101 : vector<8x128xi1>, vector<8x128xf32>
    %cst_42 = arith.constant dense<0xFF800000> : vector<8xf32>
    %105 = vector.multi_reduction <maximumf>, %104, %cst_42 [1] : vector<8x128xf32> to vector<8xf32>
    %106 = vector.shape_cast %105 : vector<8xf32> to vector<8x1xf32>
    %107 = vector.broadcast %106 : vector<8x1xf32> to vector<8x128xf32>
    %108 = arith.subf %104, %107 : vector<8x128xf32>
    %109 = math.exp %108 : vector<8x128xf32>
    %cst_43 = arith.constant dense<0.000000e+00> : vector<8xf32>
    %110 = vector.multi_reduction <add>, %109, %cst_43 [1] : vector<8x128xf32> to vector<8xf32>
    %111 = vector.shape_cast %110 : vector<8xf32> to vector<8x1xf32>
    %112 = math.log %111 : vector<8x1xf32>
    %113 = arith.addf %106, %112 : vector<8x1xf32>
    %114 = arith.subf %113, %56 : vector<8x1xf32>
    %115 = arith.cmpf oge, %56, %106 : vector<8x1xf32>
    %116 = arith.extui %115 : vector<8x1xi1> to vector<8x1xi32>
    %117 = arith.sitofp %116 : vector<8x1xi32> to vector<8x1xf32>
    %118 = tpu.iota {dimensions = array<i32: 1>} : vector<8x128xi32>
    %c0_i32 = arith.constant 0 : i32
    %119 = vector.broadcast %c0_i32 : i32 to vector<8x128xi32>
    %120 = arith.cmpi eq, %118, %119 : vector<8x128xi32>
    %c1_i32 = arith.constant 1 : i32
    %121 = vector.broadcast %c1_i32 : i32 to vector<8x128xi32>
    %122 = arith.cmpi eq, %118, %121 : vector<8x128xi32>
    %cst_44 = arith.constant 0.000000e+00 : f32
    %123 = vector.shape_cast %117 : vector<8x1xf32> to vector<8x1xf32>
    %124 = vector.broadcast %123 : vector<8x1xf32> to vector<8x128xf32>
    %125 = vector.broadcast %cst_44 : f32 to vector<8x128xf32>
    %126 = arith.select %122, %124, %125 : vector<8x128xi1>, vector<8x128xf32>
    %127 = vector.shape_cast %114 : vector<8x1xf32> to vector<8x1xf32>
    %128 = vector.broadcast %127 : vector<8x1xf32> to vector<8x128xf32>
    %129 = arith.select %120, %128, %126 : vector<8x128xi1>, vector<8x128xf32>
    %c0_45 = arith.constant 0 : index
    %c0_46 = arith.constant 0 : index
    %130 = vector.load %arg4[%c0_45, %c0_46] : memref<8x128xf32, #tpu.memory_space<vmem>>, vector<8x128xf32>
    tpu.vector_store %arg4[%c0_45, %c0_46], %129 {strides = array<i32>} : memref<8x128xf32, #tpu.memory_space<vmem>>, vector<8x128xf32>,
    return
  }
  func.func @transform_0(%arg0: i32) -> (i32, i32) {
    %c0_i32 = arith.constant 0 : i32
    %c0_i32_0 = arith.constant 0 : i32
    return %arg0, %c0_i32 : i32, i32
  }
  func.func @transform_1(%arg0: i32) -> (i32, i32) {
    %c0_i32 = arith.constant 0 : i32
    %c0_i32_0 = arith.constant 0 : i32
    return %arg0, %c0_i32 : i32, i32
  }
  func.func @transform_2(%arg0: i32) -> (i32, i32, i32) {
    %c0_i32 = arith.constant 0 : i32
    %c0_i32_0 = arith.constant 0 : i32
    %c0_i32_1 = arith.constant 0 : i32
    %c0_i32_2 = arith.constant 0 : i32
    return %c0_i32, %c0_i32_0, %c0_i32_1 : i32, i32, i32
  }
  func.func @transform_3(%arg0: i32) -> (i32, i32) {
    %c0_i32 = arith.constant 0 : i32
    %c0_i32_0 = arith.constant 0 : i32
    return %arg0, %c0_i32 : i32, i32
  }
}

module attributes {stable_mosaic.version = 11 : i64} {
  func.func @aaminter_kernel(%arg0: i32, %arg1: memref<8x32xf32, #tpu.memory_space<vmem>>, %arg2: memref<8x1xi32, #tpu.memory_space<vmem>>, %arg3: memref<3x32x128xbf16, #tpu.memory_space<vmem>>, %arg4: memref<8x128xf32, #tpu.memory_space<vmem>>) attributes {dimension_semantics = [#tpu.dimension_semantics<parallel>], iteration_bounds = array<i64: 1>, scalar_prefetch = 0 : i64, scratch_operands = 0 : i64, tpu.core_type = #tpu.core_type<tc>, window_params = [{transform_indices = @transform_0, window_bounds = array<i64: 8, 32>}, {transform_indices = @transform_1, window_bounds = array<i64: 8, 1>}, {pipeline_mode = #tpu.pipeline_mode<synchronous>, transform_indices = @transform_2, window_bounds = array<i64: 3, 32, 128>}, {transform_indices = @transform_3, window_bounds = array<i64: 8, 128>}]} {
    %c0 = arith.constant 0 : index
    %c0_0 = arith.constant 0 : index
    %0 = vector.load %arg1[%c0, %c0_0] : memref<8x32xf32, #tpu.memory_space<vmem>>, vector<8x32xf32>
    %c0_1 = arith.constant 0 : index
    %c0_2 = arith.constant 0 : index
    %1 = vector.load %arg2[%c0_1, %c0_2] : memref<8x1xi32, #tpu.memory_space<vmem>>, vector<8x1xi32>
    %2 = arith.mulf %0, %0 : vector<8x32xf32>
    %cst = arith.constant dense<0.000000e+00> : vector<8xf32>
    %3 = vector.multi_reduction <add>, %2, %cst [1] : vector<8x32xf32> to vector<8xf32>
    %4 = vector.shape_cast %3 : vector<8xf32> to vector<8x1xf32>
    %cst_3 = arith.constant 1.000000e-24 : f32
    %5 = vector.broadcast %cst_3 : f32 to vector<8x1xf32>
    %6 = arith.maximumf %4, %5 : vector<8x1xf32>
    %7 = math.rsqrt %6 : vector<8x1xf32>
    %8 = vector.broadcast %7 : vector<8x1xf32> to vector<8x32xf32>
    %9 = arith.mulf %0, %8 : vector<8x32xf32>
    %10 = arith.truncf %9 : vector<8x32xf32> to vector<8x32xbf16>
    %c0_4 = arith.constant 0 : index
    %c0_5 = arith.constant 0 : index
    %c0_6 = arith.constant 0 : index
    %11 = vector.load %arg3[%c0_4, %c0_5, %c0_6] : memref<3x32x128xbf16, #tpu.memory_space<vmem>>, vector<1x32x128xbf16>
    %12 = vector.shape_cast %11 : vector<1x32x128xbf16> to vector<32x128xbf16>
    %cst_7 = arith.constant dense<0.000000e+00> : vector<8x128xf32>
    %13 = tpu.matmul %10, %12, %cst_7 {dimension_numbers = #tpu.dot_dimension_numbers<[1], [0], [0], [1], [0, 0, 1, 1], [], []>} : vector<8x32xbf16>, vector<32x128xbf16>, vector<8x128xf32> -> vector<8x128xf32>
    %c1 = arith.constant 1 : index
    %c0_8 = arith.constant 0 : index
    %c0_9 = arith.constant 0 : index
    %14 = vector.load %arg3[%c1, %c0_8, %c0_9] : memref<3x32x128xbf16, #tpu.memory_space<vmem>>, vector<1x32x128xbf16>
    %15 = vector.shape_cast %14 : vector<1x32x128xbf16> to vector<32x128xbf16>
    %cst_10 = arith.constant dense<0.000000e+00> : vector<8x128xf32>
    %16 = tpu.matmul %10, %15, %cst_10 {dimension_numbers = #tpu.dot_dimension_numbers<[1], [0], [0], [1], [0, 0, 1, 1], [], []>} : vector<8x32xbf16>, vector<32x128xbf16>, vector<8x128xf32> -> vector<8x128xf32>
    %17 = arith.maximumf %13, %16 : vector<8x128xf32>
    %c2 = arith.constant 2 : index
    %c0_11 = arith.constant 0 : index
    %c0_12 = arith.constant 0 : index
    %18 = vector.load %arg3[%c2, %c0_11, %c0_12] : memref<3x32x128xbf16, #tpu.memory_space<vmem>>, vector<1x32x128xbf16>
    %19 = vector.shape_cast %18 : vector<1x32x128xbf16> to vector<32x128xbf16>
    %cst_13 = arith.constant dense<0.000000e+00> : vector<8x128xf32>
    %20 = tpu.matmul %10, %19, %cst_13 {dimension_numbers = #tpu.dot_dimension_numbers<[1], [0], [0], [1], [0, 0, 1, 1], [], []>} : vector<8x32xbf16>, vector<32x128xbf16>, vector<8x128xf32> -> vector<8x128xf32>
    %21 = arith.maximumf %17, %20 : vector<8x128xf32>
    %22 = tpu.iota {dimensions = array<i32: 1>} : vector<8x128xi32>
    %23 = vector.broadcast %1 : vector<8x1xi32> to vector<8x128xi32>
    %24 = arith.cmpi eq, %22, %23 : vector<8x128xi32>
    %25 = tpu.iota {dimensions = array<i32: 1>} : vector<1x128xi32>
    %c16_i32 = arith.constant 16 : i32
    %26 = vector.broadcast %c16_i32 : i32 to vector<1x128xi32>
    %27 = arith.cmpi slt, %25, %26 : vector<1x128xi32>
    %cst_14 = arith.constant 0.000000e+00 : f32
    %cst_15 = arith.constant -1.000000e+30 : f32
    %28 = vector.broadcast %cst_14 : f32 to vector<1x128xf32>
    %29 = vector.broadcast %cst_15 : f32 to vector<1x128xf32>
    %30 = arith.select %27, %28, %29 : vector<1x128xi1>, vector<1x128xf32>
    %cst_16 = arith.constant 0.000000e+00 : f32
    %31 = vector.broadcast %cst_16 : f32 to vector<8x128xf32>
    %32 = arith.select %24, %21, %31 : vector<8x128xi1>, vector<8x128xf32>
    %cst_17 = arith.constant dense<0.000000e+00> : vector<8xf32>
    %33 = vector.multi_reduction <add>, %32, %cst_17 [1] : vector<8x128xf32> to vector<8xf32>
    %34 = vector.shape_cast %33 : vector<8xf32> to vector<8x1xf32>
    %35 = arith.mulf %34, %34 : vector<8x1xf32>
    %cst_18 = arith.constant 1.000000e+00 : f32
    %36 = vector.broadcast %cst_18 : f32 to vector<8x1xf32>
    %37 = arith.subf %36, %35 : vector<8x1xf32>
    %cst_19 = arith.constant 0.000000e+00 : f32
    %cst_20 = arith.constant 1.000000e+00 : f32
    %38 = vector.broadcast %cst_19 : f32 to vector<8x1xf32>
    %39 = arith.maximumf %38, %37 : vector<8x1xf32>
    %40 = vector.broadcast %cst_20 : f32 to vector<8x1xf32>
    %41 = arith.minimumf %40, %39 : vector<8x1xf32>
    %42 = math.sqrt %41 : vector<8x1xf32>
    %cst_21 = arith.constant 0.980066597 : f32
    %43 = vector.broadcast %cst_21 : f32 to vector<8x1xf32>
    %44 = arith.mulf %34, %43 : vector<8x1xf32>
    %cst_22 = arith.constant 0.198669329 : f32
    %45 = vector.broadcast %cst_22 : f32 to vector<8x1xf32>
    %46 = arith.mulf %42, %45 : vector<8x1xf32>
    %47 = arith.subf %44, %46 : vector<8x1xf32>
    %cst_23 = arith.constant -0.980066597 : f32
    %48 = vector.broadcast %cst_23 : f32 to vector<8x1xf32>
    %49 = arith.subf %34, %48 : vector<8x1xf32>
    %cst_24 = arith.constant 0.000000e+00 : f32
    %50 = vector.broadcast %cst_24 : f32 to vector<8x1xf32>
    %51 = arith.cmpf ogt, %49, %50 : vector<8x1xf32>
    %cst_25 = arith.constant 0.0397338644 : f32
    %52 = vector.broadcast %cst_25 : f32 to vector<8x1xf32>
    %53 = arith.subf %34, %52 : vector<8x1xf32>
    %54 = arith.select %51, %47, %53 : vector<8x1xi1>, vector<8x1xf32>
    %cst_26 = arith.constant 3.000000e+01 : f32
    %55 = vector.broadcast %cst_26 : f32 to vector<8x1xf32>
    %56 = arith.mulf %54, %55 : vector<8x1xf32>
    %cst_27 = arith.constant -1.000000e+00 : f32
    %57 = vector.broadcast %cst_27 : f32 to vector<8x128xf32>
    %58 = arith.select %24, %57, %21 : vector<8x128xi1>, vector<8x128xf32>
    %59 = vector.broadcast %30 : vector<1x128xf32> to vector<8x128xf32>
    %60 = arith.addf %58, %59 : vector<8x128xf32>
    %cst_28 = arith.constant 0x7F800000 : f32
    %61 = vector.broadcast %cst_28 : f32 to vector<8x1xf32>
    %62 = vector.broadcast %61 : vector<8x1xf32> to vector<8x128xf32>
    %63 = arith.cmpf olt, %60, %62 : vector<8x128xf32>
    %cst_29 = arith.constant 0xFF800000 : f32
    %64 = vector.broadcast %cst_29 : f32 to vector<8x128xf32>
    %65 = arith.select %63, %60, %64 : vector<8x128xi1>, vector<8x128xf32>
    %cst_30 = arith.constant dense<0xFF800000> : vector<8xf32>
    %66 = vector.multi_reduction <maximumf>, %65, %cst_30 [1] : vector<8x128xf32> to vector<8xf32>
    %67 = vector.shape_cast %66 : vector<8xf32> to vector<8x1xf32>
    %68 = vector.broadcast %67 : vector<8x1xf32> to vector<8x128xf32>
    %69 = arith.cmpf olt, %60, %68 : vector<8x128xf32>
    %cst_31 = arith.constant 0xFF800000 : f32
    %70 = vector.broadcast %cst_31 : f32 to vector<8x128xf32>
    %71 = arith.select %69, %60, %70 : vector<8x128xi1>, vector<8x128xf32>
    %cst_32 = arith.constant dense<0xFF800000> : vector<8xf32>
    %72 = vector.multi_reduction <maximumf>, %71, %cst_32 [1] : vector<8x128xf32> to vector<8xf32>
    %73 = vector.shape_cast %72 : vector<8xf32> to vector<8x1xf32>
    %74 = vector.broadcast %73 : vector<8x1xf32> to vector<8x128xf32>
    %75 = arith.cmpf olt, %60, %74 : vector<8x128xf32>
    %cst_33 = arith.constant 0xFF800000 : f32
    %76 = vector.broadcast %cst_33 : f32 to vector<8x128xf32>
    %77 = arith.select %75, %60, %76 : vector<8x128xi1>, vector<8x128xf32>
    %cst_34 = arith.constant dense<0xFF800000> : vector<8xf32>
    %78 = vector.multi_reduction <maximumf>, %77, %cst_34 [1] : vector<8x128xf32> to vector<8xf32>
    %79 = vector.shape_cast %78 : vector<8xf32> to vector<8x1xf32>
    %80 = vector.broadcast %79 : vector<8x1xf32> to vector<8x128xf32>
    %81 = arith.cmpf olt, %60, %80 : vector<8x128xf32>
    %cst_35 = arith.constant 0xFF800000 : f32
    %82 = vector.broadcast %cst_35 : f32 to vector<8x128xf32>
    %83 = arith.select %81, %60, %82 : vector<8x128xi1>, vector<8x128xf32>
    %cst_36 = arith.constant dense<0xFF800000> : vector<8xf32>
    %84 = vector.multi_reduction <maximumf>, %83, %cst_36 [1] : vector<8x128xf32> to vector<8xf32>
    %85 = vector.shape_cast %84 : vector<8xf32> to vector<8x1xf32>
    %86 = vector.broadcast %85 : vector<8x1xf32> to vector<8x128xf32>
    %87 = arith.cmpf olt, %60, %86 : vector<8x128xf32>
    %cst_37 = arith.constant 0xFF800000 : f32
    %88 = vector.broadcast %cst_37 : f32 to vector<8x128xf32>
    %89 = arith.select %87, %60, %88 : vector<8x128xi1>, vector<8x128xf32>
    %cst_38 = arith.constant dense<0xFF800000> : vector<8xf32>
    %90 = vector.multi_reduction <maximumf>, %89, %cst_38 [1] : vector<8x128xf32> to vector<8xf32>
    %91 = vector.shape_cast %90 : vector<8xf32> to vector<8x1xf32>
    %92 = vector.broadcast %91 : vector<8x1xf32> to vector<8x128xf32>
    %93 = arith.cmpf oge, %60, %92 : vector<8x128xf32>
    %cst_39 = arith.constant 6.000000e-02 : f32
    %cst_40 = arith.constant 0.000000e+00 : f32
    %94 = vector.broadcast %cst_39 : f32 to vector<8x128xf32>
    %95 = vector.broadcast %cst_40 : f32 to vector<8x128xf32>
    %96 = arith.select %93, %94, %95 : vector<8x128xi1>, vector<8x128xf32>
    %97 = arith.addf %21, %96 : vector<8x128xf32>
    %cst_41 = arith.constant 3.000000e+01 : f32
    %98 = vector.broadcast %cst_41 : f32 to vector<8x128xf32>
    %99 = arith.mulf %97, %98 : vector<8x128xf32>
    %100 = vector.broadcast %30 : vector<1x128xf32> to vector<8x128xf32>
    %101 = arith.addf %99, %100 : vector<8x128xf32>
    %102 = vector.shape_cast %56 : vector<8x1xf32> to vector<8x1xf32>
    %103 = vector.broadcast %102 : vector<8x1xf32> to vector<8x128xf32>
    %104 = arith.select %24, %103, %101 : vector<8x128xi1>, vector<8x128xf32>
    %cst_42 = arith.constant dense<0xFF800000> : vector<8xf32>
    %105 = vector.multi_reduction <maximumf>, %104, %cst_42 [1] : vector<8x128xf32> to vector<8xf32>
    %106 = vector.shape_cast %105 : vector<8xf32> to vector<8x1xf32>
    %107 = vector.broadcast %106 : vector<8x1xf32> to vector<8x128xf32>
    %108 = arith.subf %104, %107 : vector<8x128xf32>
    %109 = math.exp %108 : vector<8x128xf32>
    %cst_43 = arith.constant dense<0.000000e+00> : vector<8xf32>
    %110 = vector.multi_reduction <add>, %109, %cst_43 [1] : vector<8x128xf32> to vector<8xf32>
    %111 = vector.shape_cast %110 : vector<8xf32> to vector<8x1xf32>
    %112 = math.log %111 : vector<8x1xf32>
    %113 = arith.addf %106, %112 : vector<8x1xf32>
    %114 = arith.subf %113, %56 : vector<8x1xf32>
    %115 = arith.cmpf oge, %56, %106 : vector<8x1xf32>
    %116 = arith.extui %115 : vector<8x1xi1> to vector<8x1xi32>
    %117 = arith.sitofp %116 : vector<8x1xi32> to vector<8x1xf32>
    %118 = tpu.iota {dimensions = array<i32: 1>} : vector<8x128xi32>
    %c0_i32 = arith.constant 0 : i32
    %119 = vector.broadcast %c0_i32 : i32 to vector<8x128xi32>
    %120 = arith.cmpi eq, %118, %119 : vector<8x128xi32>
    %c1_i32 = arith.constant 1 : i32
    %121 = vector.broadcast %c1_i32 : i32 to vector<8x128xi32>
    %122 = arith.cmpi eq, %118, %121 : vector<8x128xi32>
    %cst_44 = arith.constant 0.000000e+00 : f32
    %123 = vector.shape_cast %117 : vector<8x1xf32> to vector<8x1xf32>
    %124 = vector.broadcast %123 : vector<8x1xf32> to vector<8x128xf32>
    %125 = vector.broadcast %cst_44 : f32 to vector<8x128xf32>
    %126 = arith.select %122, %124, %125 : vector<8x128xi1>, vector<8x128xf32>
    %127 = vector.shape_cast %114 : vector<8x1xf32> to vector<8x1xf32>
    %128 = vector.broadcast %127 : vector<8x1xf32> to vector<8x128xf32>
    %129 = arith.select %120, %128, %126 : vector<8x128xi1>, vector<8x128xf32>
    %c0_45 = arith.constant 0 : index
    %c0_46 = arith.constant 0 : index
    %130 = vector.load %arg4[%c0_45, %c0_46] : memref<8x128xf32, #tpu.memory_space<vmem>>, vector<8x128xf32>
    tpu.vector_store %arg4[%c0_45, %c0_46], %129 {strides = array<i32>} : memref<8x128xf32, #tpu.memory_space<vmem>>, vector<8x128xf32>,
    return
  }
  func.func @transform_0(%arg0: i32) -> (i32, i32) {
    %c0_i32 = arith.constant 0 : i32
    %c0_i32_0 = arith.constant 0 : i32
    return %arg0, %c0_i32 : i32, i32
  }
  func.func @transform_1(%arg0: i32) -> (i32, i32) {
    %c0_i32 = arith.constant 0 : i32
    %c0_i32_0 = arith.constant 0 : i32
    return %arg0, %c0_i32 : i32, i32
  }
  func.func @transform_2(%arg0: i32) -> (i32, i32, i32) {
    %c0_i32 = arith.constant 0 : i32
    %c0_i32_0 = arith.constant 0 : i32
    %c0_i32_1 = arith.constant 0 : i32
    %c0_i32_2 = arith.constant 0 : i32
    return %c0_i32, %c0_i32_0, %c0_i32_1 : i32, i32, i32
  }
  func.func @transform_3(%arg0: i32) -> (i32, i32) {
    %c0_i32 = arith.constant 0 : i32
    %c0_i32_0 = arith.constant 0 : i32
    return %arg0, %c0_i32 : i32, i32
  }
}

</mosaic_0001>

<llo_original>
// kernel: tpu_custom_call.1
$region0: #{tpu_custom_call.1}
  #allocation0 [shape = 'u32[]', space=smem, size = 0x4, offset = 0x4, fixed_abs, tag = 'smem constant byte address 0x4 - core index']
  #allocation1 [shape = 'u32[144,128]{1,0:T(1,128)}', space=vmem, size = 0x12000, scoped, tag = 'internal scratch']
  %s0 = inlined_call_operand.vmem [shape: f32[8,32], index: 0, kind: input, shape index: {}]
  %s1 = inlined_call_operand.vmem [shape: s32[8,1], index: 1, kind: input, shape index: {}]
  %s2 = inlined_call_operand.hbm [shape: bf16[3,32,128], index: 2, kind: input, shape index: {}]
  %s3 = inlined_call_operand.hbm [shape: f32[8,128], index: 3, kind: output, shape index: {}]
  %s4 = sld [smem:[#allocation0]]
  $region26: #{tpu_custom_call.1} parent=0
    _
  %s6 = ssub.s32 1, %s4
  %s7 = scalar_select 0, %s6, %s4
  $region1: #{tpu_custom_call.1} parent=0
    #allocation2 [shape = 'u8[24576]{0}', space=vmem, size = 0x6000, scoped, tag = 'input window, operand 2, single buffered']
    #allocation3 [shape = 's32[1]{0}', space=sflag, size = 0x4, scoped, tag = 'scoped memory for tpu_custom_call.1']
    #allocation4 [shape = 's32[1]{0}', space=sflag, size = 0x4, scoped, tag = 'scoped memory for tpu_custom_call.1']
    #allocation5 [shape = 'u8[4096]{0}', space=vmem, size = 0x1000, scoped, tag = 'output window, operand 0, single buffered']
    %8 = vsyncpa [#allocation3], 0
    %9 = vsyncpa [#allocation4], 0
    // Predicated region
    $region2: #{tpu_custom_call.1} parent=1 // pred_check
      _
    $region3: #{tpu_custom_call.1} parent=1 // pred_check_branch
      %11 = sbr.rel (0) target = $region5
    $region4: #{tpu_custom_call.1} parent=1 // pred_region
      _
    $region5: #{tpu_custom_call.1} parent=1 // pred_fallthru
      _
    // Predicated region
    $region6: #{tpu_custom_call.1} parent=1 // pred_check
      _
    $region7: #{tpu_custom_call.1} parent=1 // pred_check_branch
      %13 = sbr.rel (0) target = $region9
    $region8: #{tpu_custom_call.1} parent=1 // pred_region
      _
    $region9: #{tpu_custom_call.1} parent=1 // pred_fallthru
      _
    // Predicated region
    $region10: #{tpu_custom_call.1} parent=1 // pred_check
      _
    $region11: #{tpu_custom_call.1} parent=1 // pred_check_branch
      %15 = sbr.rel (0) target = $region13
    $region12: #{tpu_custom_call.1} parent=1 // pred_region
      %s17 = ssub.s32 768, 768
      %18 = vsyncadd [#allocation3], %s17
      %s19 = sshll.u32 [#allocation2], 4
      %s20 = int_to_ptr.vmem [resolvable:$true] %s19
      %25 = dma.hbm_to_vmem [thread:$0]  %s2, 768, %s20, [#allocation3], 64, 64, 4
    $region13: #{tpu_custom_call.1} parent=1 // pred_fallthru
      _
    // Predicated region
    $region14: #{tpu_custom_call.1} parent=1 // pred_check
      _
    $region15: #{tpu_custom_call.1} parent=1 // pred_check_branch
      %27 = sbr.rel (0) target = $region17
    $region16: #{tpu_custom_call.1} parent=1 // pred_region
      %28 = dma.done [#allocation3], 768
    $region17: #{tpu_custom_call.1} parent=1 // pred_fallthru
      _
    %v30 = vld [vmem:[%s0] sm:$0xff]
    %v31 = vld [vmem:[%s1] sm:$0xff]
    %v32 = vmul.f32 %v30, %v30
    %vm33 = vcmask 261120
    %v34 = vsel %vm33, %v32, 0.0
    %35 = vadd.xlane.f32.xlu0 %v34
    %v36 = vpop.xlane.xlu0 %35
    %v37 = vmax.f32 %v36, 1e-24
    %v38 = vrsqrt.pop %v37
    %v39 = vmul.f32 %v30, %v38
    %v40 = vpack.c.bf16 %v39, %v39
    %v41 = vld [vmem:[#allocation2] sm:$0xf]
    %v42 = vld [vmem:[#allocation2 + $0x4] sm:$0xf]
    %v43 = vld [vmem:[#allocation2 + $0x8] sm:$0xf]
    %v44 = vld [vmem:[#allocation2 + $0xc] sm:$0xf]
    %v49 = vunpack.c.l.b16 %v41
    %v50 = vunpack.c.l.b16 %v42
    %v51 = vunpack.c.l.b16 %v43
    %v52 = vunpack.c.l.b16 %v44
    %v53 = vpack.c.b16 %v50, %v49
    %v54 = vpack.c.b16 %v52, %v51
    %v58 = vsel %vm33, %v40, 0
    %60 = vmatprep.subr.bf16.mxu0 0
    %61 = vmatpush1.bf16.msra.mxu0 %v53
    %62 = vmatprep.subr.bf16.mxu0 0
    %63 = vmatpush1.bf16.msra.mxu0 %v54
    %64 = vmatprep.subr.bf16.mxu0 0
    %65 = vmatpush1.bf16.msra.mxu0 0
    %66 = vmatprep.subr.bf16.mxu0 0
    %67 = vmatpush1.bf16.msra.mxu0 0
    %68 = vmatprep.subr.bf16.mxu0 0
    %69 = vmatpush1.bf16.msra.mxu0 0
    %70 = vmatprep.subr.bf16.mxu0 0
    %71 = vmatpush1.bf16.msra.mxu0 0
    %72 = vmatprep.subr.bf16.mxu0 0
    %73 = vmatpush1.bf16.msra.mxu0 0
    %74 = vmatprep.subr.bf16.mxu0 0
    %75 = vmatpush1.bf16.msra.mxu0 0
    %76 = vmatprep.subr.bf16.mxu0 0
    %77 = vmatpush1.bf16.msra.mxu0 0
    %78 = vmatprep.subr.bf16.mxu0 0
    %79 = vmatpush1.bf16.msra.mxu0 0
    %80 = vmatprep.subr.bf16.mxu0 0
    %81 = vmatpush1.bf16.msra.mxu0 0
    %82 = vmatprep.subr.bf16.mxu0 0
    %83 = vmatpush1.bf16.msra.mxu0 0
    %84 = vmatprep.subr.bf16.mxu0 0
    %85 = vmatpush1.bf16.msra.mxu0 0
    %86 = vmatprep.subr.bf16.mxu0 0
    %87 = vmatpush1.bf16.msra.mxu0 0
    %88 = vmatprep.subr.bf16.mxu0 0
    %89 = vmatpush1.bf16.msra.mxu0 0
    %90 = vmatprep.subr.bf16.mxu0 0
    %91 = vmatpush1.bf16.msra.mxu0 0
    %92 = vmatprep.mubr.bf16.mxu0 0
    %93 = vmatmul.mubr.bf16.gmra.mrb[0].mxu0 %v58
    %v94 = vpop.f32.mrb[0].mxu0
    %v95 = vadd.f32 0.0, %v94
    %v96 = vpop.f32.mrb[0].mxu0
    %v97 = vpop.f32.mrb[0].mxu0
    %v98 = vpop.f32.mrb[0].mxu0
    %99 = vdwg.mxu0
    %s100 = scalar_lea.vmem [#allocation2], 16
    %v101 = vld [vmem:[%s100] sm:$0xf]
    %v102 = vld [vmem:[%s100 + $0x4] sm:$0xf]
    %v103 = vld [vmem:[%s100 + $0x8] sm:$0xf]
    %v104 = vld [vmem:[%s100 + $0xc] sm:$0xf]
    %v109 = vunpack.c.l.b16 %v101
    %v110 = vunpack.c.l.b16 %v102
    %v111 = vunpack.c.l.b16 %v103
    %v112 = vunpack.c.l.b16 %v104
    %v113 = vpack.c.b16 %v110, %v109
    %v114 = vpack.c.b16 %v112, %v111
    %117 = vmatprep.subr.bf16.mxu0 0
    %118 = vmatpush1.bf16.msra.mxu0 %v113
    %119 = vmatprep.subr.bf16.mxu0 0
    %120 = vmatpush1.bf16.msra.mxu0 %v114
    %121 = vmatprep.subr.bf16.mxu0 0
    %122 = vmatpush1.bf16.msra.mxu0 0
    %123 = vmatprep.subr.bf16.mxu0 0
    %124 = vmatpush1.bf16.msra.mxu0 0
    %125 = vmatprep.subr.bf16.mxu0 0
    %126 = vmatpush1.bf16.msra.mxu0 0
    %127 = vmatprep.subr.bf16.mxu0 0
    %128 = vmatpush1.bf16.msra.mxu0 0
    %129 = vmatprep.subr.bf16.mxu0 0
    %130 = vmatpush1.bf16.msra.mxu0 0
    %131 = vmatprep.subr.bf16.mxu0 0
    %132 = vmatpush1.bf16.msra.mxu0 0
    %133 = vmatprep.subr.bf16.mxu0 0
    %134 = vmatpush1.bf16.msra.mxu0 0
    %135 = vmatprep.subr.bf16.mxu0 0
    %136 = vmatpush1.bf16.msra.mxu0 0
    %137 = vmatprep.subr.bf16.mxu0 0
    %138 = vmatpush1.bf16.msra.mxu0 0
    %139 = vmatprep.subr.bf16.mxu0 0
    %140 = vmatpush1.bf16.msra.mxu0 0
    %141 = vmatprep.subr.bf16.mxu0 0
    %142 = vmatpush1.bf16.msra.mxu0 0
    %143 = vmatprep.subr.bf16.mxu0 0
    %144 = vmatpush1.bf16.msra.mxu0 0
    %145 = vmatprep.subr.bf16.mxu0 0
    %146 = vmatpush1.bf16.msra.mxu0 0
    %147 = vmatprep.subr.bf16.mxu0 0
    %148 = vmatpush1.bf16.msra.mxu0 0
    %149 = vmatprep.mubr.bf16.mxu0 0
    %150 = vmatmul.mubr.bf16.gmra.mrb[0].mxu0 %v58
    %v151 = vpop.f32.mrb[0].mxu0
    %v152 = vadd.f32 0.0, %v151
    %v153 = vpop.f32.mrb[0].mxu0
    %v154 = vpop.f32.mrb[0].mxu0
    %v155 = vpop.f32.mrb[0].mxu0
    %156 = vdwg.mxu0
    %v157 = vmax.f32 %v95, %v152
    %s158 = scalar_lea.vmem [#allocation2], 32
    %v159 = vld [vmem:[%s158] sm:$0xf]
    %v160 = vld [vmem:[%s158 + $0x4] sm:$0xf]
    %v161 = vld [vmem:[%s158 + $0x8] sm:$0xf]
    %v162 = vld [vmem:[%s158 + $0xc] sm:$0xf]
    %v167 = vunpack.c.l.b16 %v159
    %v168 = vunpack.c.l.b16 %v160
    %v169 = vunpack.c.l.b16 %v161
    %v170 = vunpack.c.l.b16 %v162
    %v171 = vpack.c.b16 %v168, %v167
    %v172 = vpack.c.b16 %v170, %v169
    %175 = vmatprep.subr.bf16.mxu0 0
    %176 = vmatpush1.bf16.msra.mxu0 %v171
    %177 = vmatprep.subr.bf16.mxu0 0
    %178 = vmatpush1.bf16.msra.mxu0 %v172
    %179 = vmatprep.subr.bf16.mxu0 0
    %180 = vmatpush1.bf16.msra.mxu0 0
    %181 = vmatprep.subr.bf16.mxu0 0
    %182 = vmatpush1.bf16.msra.mxu0 0
    %183 = vmatprep.subr.bf16.mxu0 0
    %184 = vmatpush1.bf16.msra.mxu0 0
    %185 = vmatprep.subr.bf16.mxu0 0
    %186 = vmatpush1.bf16.msra.mxu0 0
    %187 = vmatprep.subr.bf16.mxu0 0
    %188 = vmatpush1.bf16.msra.mxu0 0
    %189 = vmatprep.subr.bf16.mxu0 0
    %190 = vmatpush1.bf16.msra.mxu0 0
    %191 = vmatprep.subr.bf16.mxu0 0
    %192 = vmatpush1.bf16.msra.mxu0 0
    %193 = vmatprep.subr.bf16.mxu0 0
    %194 = vmatpush1.bf16.msra.mxu0 0
    %195 = vmatprep.subr.bf16.mxu0 0
    %196 = vmatpush1.bf16.msra.mxu0 0
    %197 = vmatprep.subr.bf16.mxu0 0
    %198 = vmatpush1.bf16.msra.mxu0 0
    %199 = vmatprep.subr.bf16.mxu0 0
    %200 = vmatpush1.bf16.msra.mxu0 0
    %201 = vmatprep.subr.bf16.mxu0 0
    %202 = vmatpush1.bf16.msra.mxu0 0
    %203 = vmatprep.subr.bf16.mxu0 0
    %204 = vmatpush1.bf16.msra.mxu0 0
    %205 = vmatprep.subr.bf16.mxu0 0
    %206 = vmatpush1.bf16.msra.mxu0 0
    %207 = vmatprep.mubr.bf16.mxu0 0
    %208 = vmatmul.mubr.bf16.gmra.mrb[0].mxu0 %v58
    %v209 = vpop.f32.mrb[0].mxu0
    %v210 = vadd.f32 0.0, %v209
    %v211 = vpop.f32.mrb[0].mxu0
    %v212 = vpop.f32.mrb[0].mxu0
    %v213 = vpop.f32.mrb[0].mxu0
    %214 = vdwg.mxu0
    %v215 = vmax.f32 %v157, %v210
    %v216 = vlaneseq
    %v217 = vand.u32 %v216, 127
    %218 = vset.pattern.permute.xlu0 0
    %219 = vperm.xlu0 %218, %v31
    %v220 = vpop.permute.xlu0 %219
    %vm221 = vcmp.eq.s32.totalorder %v217, %v220
    %vm222 = vcmp.lt.s32.totalorder %v217, 16
    %v223 = vsel %vm222, 0.0, -1e+30
    %v224 = vsel %vm221, %v215, 0.0
    %225 = vadd.xlane.f32.xlu0 %v224
    %v226 = vpop.xlane.xlu0 %225
    %v227 = vmul.f32 %v226, %v226
    %v228 = vsub.f32 1.0, %v227
    %v229 = vmax.f32 %v228, 0.0
    %v230 = vmin.f32 %v229, 1.0
    %v231 = vrsqrt.pop %v230
    %v232 = vmul.f32 %v230, %v231
    %vm233 = vcmp.eq.f32.partialorder %v230, inf
    %v234 = vsel %vm233, %v230, %v232
    %vm235 = vcmp.eq.f32.partialorder %v230, 0.0
    %v236 = vand.u32 %v230, 2147483648
    %v237 = vsel %vm235, %v236, %v234
    %v238 = vmul.f32 %v226, 0.9800666
    %v239 = vmul.f32 %v237, 0.19866933
    %v240 = vsub.f32 %v238, %v239
    %v241 = vsub.f32 %v226, -0.9800666
    %vm242 = vcmp.gt.f32.partialorder %v241, 0.0
    %v243 = vsub.f32 %v226, 0.039733864
    %v244 = vsel %vm242, %v240, %v243
    %v245 = vmul.f32 %v244, 30.0
    %v246 = vsel %vm221, -1.0, %v215
    %v247 = vadd.f32 %v246, %v223
    %vm248 = vcmp.lt.f32.partialorder %v247, inf
    %v249 = vsel %vm248, %v247, -inf
    %250 = vmax.xlane.f32.xlu0 %v249
    %v251 = vpop.xlane.xlu0 %250
    %vm252 = vcmp.lt.f32.partialorder %v247, %v251
    %v253 = vsel %vm252, %v247, -inf
    %254 = vmax.xlane.f32.xlu0 %v253
    %v255 = vpop.xlane.xlu0 %254
    %vm256 = vcmp.lt.f32.partialorder %v247, %v255
    %v257 = vsel %vm256, %v247, -inf
    %258 = vmax.xlane.f32.xlu0 %v257
    %v259 = vpop.xlane.xlu0 %258
    %vm260 = vcmp.lt.f32.partialorder %v247, %v259
    %v261 = vsel %vm260, %v247, -inf
    %262 = vmax.xlane.f32.xlu0 %v261
    %v263 = vpop.xlane.xlu0 %262
    %vm264 = vcmp.lt.f32.partialorder %v247, %v263
    %v265 = vsel %vm264, %v247, -inf
    %266 = vmax.xlane.f32.xlu0 %v265
    %v267 = vpop.xlane.xlu0 %266
    %vm268 = vcmp.ge.f32.partialorder %v247, %v267
    %v269 = vsel %vm268, 0.06, 0.0
    %v270 = vadd.f32 %v215, %v269
    %v271 = vmul.f32 %v270, 30.0
    %v272 = vadd.f32 %v271, %v223
    %v273 = vsel %vm221, %v245, %v272
    %274 = vmax.xlane.f32.xlu0 %v273
    %v275 = vpop.xlane.xlu0 %274
    %v276 = vsub.f32 %v273, %v275
    %v277 = vmul.f32 %v276, 1.442695
    %v278 = vpow.pop %v277
    %279 = vadd.xlane.f32.xlu0 %v278
    %v280 = vpop.xlane.xlu0 %279
    %v281 = vlog2.pop %v280
    %v282 = vmul.f32 %v281, 0.6931472
    %v283 = vadd.f32 %v275, %v282
    %v284 = vsub.f32 %v283, %v245
    %vm285 = vcmp.ge.f32.partialorder %v245, %v275
    %v286 = vsel %vm285, 1, 0
    %v287 = vcvt.s32.f32 %v286
    %vm288 = vcmp.eq.s32.totalorder %v217, 0
    %vm289 = vcmp.eq.s32.totalorder %v217, 1
    %v290 = vsel %vm289, %v287, 0.0
    %v291 = vsel %vm288, %v284, %v290
    %292 = vst [vmem:[#allocation5] sm:$0xff] %v291
    // Predicated region
    $region18: #{tpu_custom_call.1} parent=1 // pred_check
      _
    $region19: #{tpu_custom_call.1} parent=1 // pred_check_branch
      %294 = sbr.rel (0) target = $region21
    $region20: #{tpu_custom_call.1} parent=1 // pred_region
      %s296 = ssub.s32 128, 128
      %297 = vsyncadd [#allocation4], %s296
      %s299 = sshll.u32 [#allocation5], 4
      %s300 = int_to_ptr.vmem [resolvable:$true] %s299
      %302 = dma.vmem_to_hbm [thread:$0]  %s300, 128, %s3, [#allocation4]
    $region21: #{tpu_custom_call.1} parent=1 // pred_fallthru
      _
    // Predicated region
    $region22: #{tpu_custom_call.1} parent=1 // pred_check
      _
    $region23: #{tpu_custom_call.1} parent=1 // pred_check_branch
      %304 = sbr.rel (0) target = $region25
    $region24: #{tpu_custom_call.1} parent=1 // pred_region
      %305 = dma.done [#allocation4], 128
    $region25: #{tpu_custom_call.1} parent=1 // pred_fallthru
      _
    %306 = vsyncpa [#allocation3], 1
    %307 = vsyncpa [#allocation4], 1

// kernel: tpu_custom_call.1
$region0: #{tpu_custom_call.1}
  #allocation0 [shape = 'u32[]', space=smem, size = 0x4, offset = 0x4, fixed_abs, tag = 'smem constant byte address 0x4 - core index']
  #allocation1 [shape = 'u32[144,128]{1,0:T(1,128)}', space=vmem, size = 0x12000, scoped, tag = 'internal scratch']
  %s0 = inlined_call_operand.vmem [shape: f32[8,32], index: 0, kind: input, shape index: {}]
  %s1 = inlined_call_operand.vmem [shape: s32[8,1], index: 1, kind: input, shape index: {}]
  %s2 = inlined_call_operand.hbm [shape: bf16[3,32,128], index: 2, kind: input, shape index: {}]
  %s3 = inlined_call_operand.hbm [shape: f32[8,128], index: 3, kind: output, shape index: {}]
  %s4 = sld [smem:[#allocation0]]
  $region26: #{tpu_custom_call.1} parent=0
    _
  %s6 = ssub.s32 1, %s4
  %s7 = scalar_select 0, %s6, %s4
  $region1: #{tpu_custom_call.1} parent=0
    #allocation2 [shape = 'u8[24576]{0}', space=vmem, size = 0x6000, scoped, tag = 'input window, operand 2, single buffered']
    #allocation3 [shape = 's32[1]{0}', space=sflag, size = 0x4, scoped, tag = 'scoped memory for tpu_custom_call.1']
    #allocation4 [shape = 's32[1]{0}', space=sflag, size = 0x4, scoped, tag = 'scoped memory for tpu_custom_call.1']
    #allocation5 [shape = 'u8[4096]{0}', space=vmem, size = 0x1000, scoped, tag = 'output window, operand 0, single buffered']
    %8 = vsyncpa [#allocation3], 0
    %9 = vsyncpa [#allocation4], 0
    // Predicated region
    $region2: #{tpu_custom_call.1} parent=1 // pred_check
      _
    $region3: #{tpu_custom_call.1} parent=1 // pred_check_branch
      %11 = sbr.rel (0) target = $region5
    $region4: #{tpu_custom_call.1} parent=1 // pred_region
      _
    $region5: #{tpu_custom_call.1} parent=1 // pred_fallthru
      _
    // Predicated region
    $region6: #{tpu_custom_call.1} parent=1 // pred_check
      _
    $region7: #{tpu_custom_call.1} parent=1 // pred_check_branch
      %13 = sbr.rel (0) target = $region9
    $region8: #{tpu_custom_call.1} parent=1 // pred_region
      _
    $region9: #{tpu_custom_call.1} parent=1 // pred_fallthru
      _
    // Predicated region
    $region10: #{tpu_custom_call.1} parent=1 // pred_check
      _
    $region11: #{tpu_custom_call.1} parent=1 // pred_check_branch
      %15 = sbr.rel (0) target = $region13
    $region12: #{tpu_custom_call.1} parent=1 // pred_region
      %s17 = ssub.s32 768, 768
      %18 = vsyncadd [#allocation3], %s17
      %s19 = sshll.u32 [#allocation2], 4
      %s20 = int_to_ptr.vmem [resolvable:$true] %s19
      %25 = dma.hbm_to_vmem [thread:$0]  %s2, 768, %s20, [#allocation3], 64, 64, 4
    $region13: #{tpu_custom_call.1} parent=1 // pred_fallthru
      _
    // Predicated region
    $region14: #{tpu_custom_call.1} parent=1 // pred_check
      _
    $region15: #{tpu_custom_call.1} parent=1 // pred_check_branch
      %27 = sbr.rel (0) target = $region17
    $region16: #{tpu_custom_call.1} parent=1 // pred_region
      %28 = dma.done [#allocation3], 768
    $region17: #{tpu_custom_call.1} parent=1 // pred_fallthru
      _
    %v30 = vld [vmem:[%s0] sm:$0xff]
    %v31 = vld [vmem:[%s1] sm:$0xff]
    %v32 = vmul.f32 %v30, %v30
    %vm33 = vcmask 261120
    %v34 = vsel %vm33, %v32, 0.0
    %35 = vadd.xlane.f32.xlu0 %v34
    %v36 = vpop.xlane.xlu0 %35
    %v37 = vmax.f32 %v36, 1e-24
    %v38 = vrsqrt.pop %v37
    %v39 = vmul.f32 %v30, %v38
    %v40 = vpack.c.bf16 %v39, %v39
    %v41 = vld [vmem:[#allocation2] sm:$0xf]
    %v42 = vld [vmem:[#allocation2 + $0x4] sm:$0xf]
    %v43 = vld [vmem:[#allocation2 + $0x8] sm:$0xf]
    %v44 = vld [vmem:[#allocation2 + $0xc] sm:$0xf]
    %v49 = vunpack.c.l.b16 %v41
    %v50 = vunpack.c.l.b16 %v42
    %v51 = vunpack.c.l.b16 %v43
    %v52 = vunpack.c.l.b16 %v44
    %v53 = vpack.c.b16 %v50, %v49
    %v54 = vpack.c.b16 %v52, %v51
    %v58 = vsel %vm33, %v40, 0
    %60 = vmatprep.subr.bf16.mxu0 0
    %61 = vmatpush1.bf16.msra.mxu0 %v53
    %62 = vmatprep.subr.bf16.mxu0 0
    %63 = vmatpush1.bf16.msra.mxu0 %v54
    %64 = vmatprep.subr.bf16.mxu0 0
    %65 = vmatpush1.bf16.msra.mxu0 0
    %66 = vmatprep.subr.bf16.mxu0 0
    %67 = vmatpush1.bf16.msra.mxu0 0
    %68 = vmatprep.subr.bf16.mxu0 0
    %69 = vmatpush1.bf16.msra.mxu0 0
    %70 = vmatprep.subr.bf16.mxu0 0
    %71 = vmatpush1.bf16.msra.mxu0 0
    %72 = vmatprep.subr.bf16.mxu0 0
    %73 = vmatpush1.bf16.msra.mxu0 0
    %74 = vmatprep.subr.bf16.mxu0 0
    %75 = vmatpush1.bf16.msra.mxu0 0
    %76 = vmatprep.subr.bf16.mxu0 0
    %77 = vmatpush1.bf16.msra.mxu0 0
    %78 = vmatprep.subr.bf16.mxu0 0
    %79 = vmatpush1.bf16.msra.mxu0 0
    %80 = vmatprep.subr.bf16.mxu0 0
    %81 = vmatpush1.bf16.msra.mxu0 0
    %82 = vmatprep.subr.bf16.mxu0 0
    %83 = vmatpush1.bf16.msra.mxu0 0
    %84 = vmatprep.subr.bf16.mxu0 0
    %85 = vmatpush1.bf16.msra.mxu0 0
    %86 = vmatprep.subr.bf16.mxu0 0
    %87 = vmatpush1.bf16.msra.mxu0 0
    %88 = vmatprep.subr.bf16.mxu0 0
    %89 = vmatpush1.bf16.msra.mxu0 0
    %90 = vmatprep.subr.bf16.mxu0 0
    %91 = vmatpush1.bf16.msra.mxu0 0
    %92 = vmatprep.mubr.bf16.mxu0 0
    %93 = vmatmul.mubr.bf16.gmra.mrb[0].mxu0 %v58
    %v94 = vpop.f32.mrb[0].mxu0
    %v95 = vadd.f32 0.0, %v94
    %v96 = vpop.f32.mrb[0].mxu0
    %v97 = vpop.f32.mrb[0].mxu0
    %v98 = vpop.f32.mrb[0].mxu0
    %99 = vdwg.mxu0
    %s100 = scalar_lea.vmem [#allocation2], 16
    %v101 = vld [vmem:[%s100] sm:$0xf]
    %v102 = vld [vmem:[%s100 + $0x4] sm:$0xf]
    %v103 = vld [vmem:[%s100 + $0x8] sm:$0xf]
    %v104 = vld [vmem:[%s100 + $0xc] sm:$0xf]
    %v109 = vunpack.c.l.b16 %v101
    %v110 = vunpack.c.l.b16 %v102
    %v111 = vunpack.c.l.b16 %v103
    %v112 = vunpack.c.l.b16 %v104
    %v113 = vpack.c.b16 %v110, %v109
    %v114 = vpack.c.b16 %v112, %v111
    %117 = vmatprep.subr.bf16.mxu0 0
    %118 = vmatpush1.bf16.msra.mxu0 %v113
    %119 = vmatprep.subr.bf16.mxu0 0
    %120 = vmatpush1.bf16.msra.mxu0 %v114
    %121 = vmatprep.subr.bf16.mxu0 0
    %122 = vmatpush1.bf16.msra.mxu0 0
    %123 = vmatprep.subr.bf16.mxu0 0
    %124 = vmatpush1.bf16.msra.mxu0 0
    %125 = vmatprep.subr.bf16.mxu0 0
    %126 = vmatpush1.bf16.msra.mxu0 0
    %127 = vmatprep.subr.bf16.mxu0 0
    %128 = vmatpush1.bf16.msra.mxu0 0
    %129 = vmatprep.subr.bf16.mxu0 0
    %130 = vmatpush1.bf16.msra.mxu0 0
    %131 = vmatprep.subr.bf16.mxu0 0
    %132 = vmatpush1.bf16.msra.mxu0 0
    %133 = vmatprep.subr.bf16.mxu0 0
    %134 = vmatpush1.bf16.msra.mxu0 0
    %135 = vmatprep.subr.bf16.mxu0 0
    %136 = vmatpush1.bf16.msra.mxu0 0
    %137 = vmatprep.subr.bf16.mxu0 0
    %138 = vmatpush1.bf16.msra.mxu0 0
    %139 = vmatprep.subr.bf16.mxu0 0
    %140 = vmatpush1.bf16.msra.mxu0 0
    %141 = vmatprep.subr.bf16.mxu0 0
    %142 = vmatpush1.bf16.msra.mxu0 0
    %143 = vmatprep.subr.bf16.mxu0 0
    %144 = vmatpush1.bf16.msra.mxu0 0
    %145 = vmatprep.subr.bf16.mxu0 0
    %146 = vmatpush1.bf16.msra.mxu0 0
    %147 = vmatprep.subr.bf16.mxu0 0
    %148 = vmatpush1.bf16.msra.mxu0 0
    %149 = vmatprep.mubr.bf16.mxu0 0
    %150 = vmatmul.mubr.bf16.gmra.mrb[0].mxu0 %v58
    %v151 = vpop.f32.mrb[0].mxu0
    %v152 = vadd.f32 0.0, %v151
    %v153 = vpop.f32.mrb[0].mxu0
    %v154 = vpop.f32.mrb[0].mxu0
    %v155 = vpop.f32.mrb[0].mxu0
    %156 = vdwg.mxu0
    %v157 = vmax.f32 %v95, %v152
    %s158 = scalar_lea.vmem [#allocation2], 32
    %v159 = vld [vmem:[%s158] sm:$0xf]
    %v160 = vld [vmem:[%s158 + $0x4] sm:$0xf]
    %v161 = vld [vmem:[%s158 + $0x8] sm:$0xf]
    %v162 = vld [vmem:[%s158 + $0xc] sm:$0xf]
    %v167 = vunpack.c.l.b16 %v159
    %v168 = vunpack.c.l.b16 %v160
    %v169 = vunpack.c.l.b16 %v161
    %v170 = vunpack.c.l.b16 %v162
    %v171 = vpack.c.b16 %v168, %v167
    %v172 = vpack.c.b16 %v170, %v169
    %175 = vmatprep.subr.bf16.mxu0 0
    %176 = vmatpush1.bf16.msra.mxu0 %v171
    %177 = vmatprep.subr.bf16.mxu0 0
    %178 = vmatpush1.bf16.msra.mxu0 %v172
    %179 = vmatprep.subr.bf16.mxu0 0
    %180 = vmatpush1.bf16.msra.mxu0 0
    %181 = vmatprep.subr.bf16.mxu0 0
    %182 = vmatpush1.bf16.msra.mxu0 0
    %183 = vmatprep.subr.bf16.mxu0 0
    %184 = vmatpush1.bf16.msra.mxu0 0
    %185 = vmatprep.subr.bf16.mxu0 0
    %186 = vmatpush1.bf16.msra.mxu0 0
    %187 = vmatprep.subr.bf16.mxu0 0
    %188 = vmatpush1.bf16.msra.mxu0 0
    %189 = vmatprep.subr.bf16.mxu0 0
    %190 = vmatpush1.bf16.msra.mxu0 0
    %191 = vmatprep.subr.bf16.mxu0 0
    %192 = vmatpush1.bf16.msra.mxu0 0
    %193 = vmatprep.subr.bf16.mxu0 0
    %194 = vmatpush1.bf16.msra.mxu0 0
    %195 = vmatprep.subr.bf16.mxu0 0
    %196 = vmatpush1.bf16.msra.mxu0 0
    %197 = vmatprep.subr.bf16.mxu0 0
    %198 = vmatpush1.bf16.msra.mxu0 0
    %199 = vmatprep.subr.bf16.mxu0 0
    %200 = vmatpush1.bf16.msra.mxu0 0
    %201 = vmatprep.subr.bf16.mxu0 0
    %202 = vmatpush1.bf16.msra.mxu0 0
    %203 = vmatprep.subr.bf16.mxu0 0
    %204 = vmatpush1.bf16.msra.mxu0 0
    %205 = vmatprep.subr.bf16.mxu0 0
    %206 = vmatpush1.bf16.msra.mxu0 0
    %207 = vmatprep.mubr.bf16.mxu0 0
    %208 = vmatmul.mubr.bf16.gmra.mrb[0].mxu0 %v58
    %v209 = vpop.f32.mrb[0].mxu0
    %v210 = vadd.f32 0.0, %v209
    %v211 = vpop.f32.mrb[0].mxu0
    %v212 = vpop.f32.mrb[0].mxu0
    %v213 = vpop.f32.mrb[0].mxu0
    %214 = vdwg.mxu0
    %v215 = vmax.f32 %v157, %v210
    %v216 = vlaneseq
    %v217 = vand.u32 %v216, 127
    %218 = vset.pattern.permute.xlu0 0
    %219 = vperm.xlu0 %218, %v31
    %v220 = vpop.permute.xlu0 %219
    %vm221 = vcmp.eq.s32.totalorder %v217, %v220
    %vm222 = vcmp.lt.s32.totalorder %v217, 16
    %v223 = vsel %vm222, 0.0, -1e+30
    %v224 = vsel %vm221, %v215, 0.0
    %225 = vadd.xlane.f32.xlu0 %v224
    %v226 = vpop.xlane.xlu0 %225
    %v227 = vmul.f32 %v226, %v226
    %v228 = vsub.f32 1.0, %v227
    %v229 = vmax.f32 %v228, 0.0
    %v230 = vmin.f32 %v229, 1.0
    %v231 = vrsqrt.pop %v230
    %v232 = vmul.f32 %v230, %v231
    %vm233 = vcmp.eq.f32.partialorder %v230, inf
    %v234 = vsel %vm233, %v230, %v232
    %vm235 = vcmp.eq.f32.partialorder %v230, 0.0
    %v236 = vand.u32 %v230, 2147483648
    %v237 = vsel %vm235, %v236, %v234
    %v238 = vmul.f32 %v226, 0.9800666
    %v239 = vmul.f32 %v237, 0.19866933
    %v240 = vsub.f32 %v238, %v239
    %v241 = vsub.f32 %v226, -0.9800666
    %vm242 = vcmp.gt.f32.partialorder %v241, 0.0
    %v243 = vsub.f32 %v226, 0.039733864
    %v244 = vsel %vm242, %v240, %v243
    %v245 = vmul.f32 %v244, 30.0
    %v246 = vsel %vm221, -1.0, %v215
    %v247 = vadd.f32 %v246, %v223
    %vm248 = vcmp.lt.f32.partialorder %v247, inf
    %v249 = vsel %vm248, %v247, -inf
    %250 = vmax.xlane.f32.xlu0 %v249
    %v251 = vpop.xlane.xlu0 %250
    %vm252 = vcmp.lt.f32.partialorder %v247, %v251
    %v253 = vsel %vm252, %v247, -inf
    %254 = vmax.xlane.f32.xlu0 %v253
    %v255 = vpop.xlane.xlu0 %254
    %vm256 = vcmp.lt.f32.partialorder %v247, %v255
    %v257 = vsel %vm256, %v247, -inf
    %258 = vmax.xlane.f32.xlu0 %v257
    %v259 = vpop.xlane.xlu0 %258
    %vm260 = vcmp.lt.f32.partialorder %v247, %v259
    %v261 = vsel %vm260, %v247, -inf
    %262 = vmax.xlane.f32.xlu0 %v261
    %v263 = vpop.xlane.xlu0 %262
    %vm264 = vcmp.lt.f32.partialorder %v247, %v263
    %v265 = vsel %vm264, %v247, -inf
    %266 = vmax.xlane.f32.xlu0 %v265
    %v267 = vpop.xlane.xlu0 %266
    %vm268 = vcmp.ge.f32.partialorder %v247, %v267
    %v269 = vsel %vm268, 0.06, 0.0
    %v270 = vadd.f32 %v215, %v269
    %v271 = vmul.f32 %v270, 30.0
    %v272 = vadd.f32 %v271, %v223
    %v273 = vsel %vm221, %v245, %v272
    %274 = vmax.xlane.f32.xlu0 %v273
    %v275 = vpop.xlane.xlu0 %274
    %v276 = vsub.f32 %v273, %v275
    %v277 = vmul.f32 %v276, 1.442695
    %v278 = vpow.pop %v277
    %279 = vadd.xlane.f32.xlu0 %v278
    %v280 = vpop.xlane.xlu0 %279
    %v281 = vlog2.pop %v280
    %v282 = vmul.f32 %v281, 0.6931472
    %v283 = vadd.f32 %v275, %v282
    %v284 = vsub.f32 %v283, %v245
    %vm285 = vcmp.ge.f32.partialorder %v245, %v275
    %v286 = vsel %vm285, 1, 0
    %v287 = vcvt.s32.f32 %v286
    %vm288 = vcmp.eq.s32.totalorder %v217, 0
    %vm289 = vcmp.eq.s32.totalorder %v217, 1
    %v290 = vsel %vm289, %v287, 0.0
    %v291 = vsel %vm288, %v284, %v290
    %292 = vst [vmem:[#allocation5] sm:$0xff] %v291
    // Predicated region
    $region18: #{tpu_custom_call.1} parent=1 // pred_check
      _
    $region19: #{tpu_custom_call.1} parent=1 // pred_check_branch
      %294 = sbr.rel (0) target = $region21
    $region20: #{tpu_custom_call.1} parent=1 // pred_region
      %s296 = ssub.s32 128, 128
      %297 = vsyncadd [#allocation4], %s296
      %s299 = sshll.u32 [#allocation5], 4
      %s300 = int_to_ptr.vmem [resolvable:$true] %s299
      %302 = dma.vmem_to_hbm [thread:$0]  %s300, 128, %s3, [#allocation4]
    $region21: #{tpu_custom_call.1} parent=1 // pred_fallthru
      _
    // Predicated region
    $region22: #{tpu_custom_call.1} parent=1 // pred_check
      _
    $region23: #{tpu_custom_call.1} parent=1 // pred_check_branch
      %304 = sbr.rel (0) target = $region25
    $region24: #{tpu_custom_call.1} parent=1 // pred_region
      %305 = dma.done [#allocation4], 128
    $region25: #{tpu_custom_call.1} parent=1 // pred_fallthru
      _
    %306 = vsyncpa [#allocation3], 1
    %307 = vsyncpa [#allocation4], 1

</llo_original>
